<compile_context>
chip_gen: v5e
topology: v5e:2x2
jax: 0.10.0
libtpu: 0.0.40
codegen_flags: <defaults>
</compile_context>

<pallas_src>
import functools

import jax
import jax.numpy as jnp
from jax.experimental import pallas as pl
from jax.experimental.pallas import tpu as pltpu

NUM_REL_CLS = 101
NEG_INF = -1e30   # f32 bias padding: padded classes vanish in the softmax


def _bag_average_kernel(feat_ref, w_ref, b_ref, out_ref, *, inv_n, mxu_dtype):
    # feat_ref: (TB, N, D) input dtype (f32) -- TB bags per grid step
    # w_ref:    (D, Cp)    mxu_dtype, VMEM-resident across the grid
    # b_ref:    (1, Cp)    f32, padded classes hold -1e30
    # out_ref:  (TB, Cp)   f32 lane/sublane-dense probability tile
    feats = feat_ref[...].astype(jnp.float32)              # cast in-kernel (VPU)
    mean = jnp.sum(feats, axis=1) * inv_n                   # (TB, D), f32 accum

    # Dropout(p=0.2) is identity at inference time.
    # TODO(synk): training-mode dropout (pltpu.prng_random_bits mask) and the
    #             "return raw logits" training branch are not implemented.

    logits = jnp.dot(mean.astype(mxu_dtype), w_ref[...],
                     preferred_element_type=jnp.float32)    # (TB, Cp) f32
    logits = logits + b_ref[...]                             # f32 + f32

    # Numerically stable softmax; exact divide so every row sums to 1.
    m = jnp.max(logits, axis=-1, keepdims=True)
    e = jnp.exp(logits - m)
    probs = e / jnp.sum(e, axis=-1, keepdims=True)
    out_ref[...] = probs.astype(out_ref.dtype)


def _round_up(x, m):
    return ((x + m - 1) // m) * m


def _choose_bag_tile(num_bags, n, d, *, tb_max=128,
                     vmem_budget_bytes=8 * 1024 * 1024):
    """Pick the bag tile TB (a multiple of 8).

    Sized against a conservative VMEM budget (the feature tile is
    double-buffered by the pipeline) so it stays safe under v7x's smaller
    per-TC VMEM, and kept small enough that the grid has >= 2 steps when
    there is enough work ("parallel" then feeds both v7x TensorCores).
    """
    b8 = _round_up(max(num_bags, 1), 8)
    per_bag_bytes = 2 * n * d * 4 + 2 * 128 * 4        # in + out double buffers
    cap = max(8, (vmem_budget_bytes // max(per_bag_bytes, 1)) // 8 * 8)
    tb = min(tb_max, b8, cap)
    if b8 >= 16 and tb >= b8:                          # single step -> split in 2
        tb = min(tb, _round_up(pl.cdiv(b8, 2), 8))
    return tb


def bag_average_forward_batched(features, weight, bias, *,
                                compute_dtype=jnp.bfloat16, bag_tile=None):
    """features: (B, N, D); weight: (D, C); bias: (C,).

    Returns (probs (B, C) float32, 0) -- eval-mode BagAverage for B bags.
    """
    b, n, d = features.shape
    c = weight.shape[1]
    cp = _round_up(c, 128)                 # lane-dense padded class dim
    pad_c = cp - c

    tb = bag_tile if bag_tile is not None else _choose_bag_tile(b, n, d)
    bp = _round_up(b, tb)

    # Features stay in their input dtype -- the cast to the MXU input dtype
    # happens in-kernel, after the f32 mean accumulation.
    feats = features
    if bp != b:                            # zero-pad to a whole number of tiles
        feats = jnp.pad(feats, ((0, bp - b), (0, 0), (0, 0)))

    # Pad class dim: zero weight columns, very negative f32 bias, so padded
    # logits contribute ~0 to the softmax and the real C probs are unchanged.
    w_p = jnp.pad(weight, ((0, 0), (0, pad_c))).astype(compute_dtype)
    b_p = jnp.pad(bias.astype(jnp.float32).reshape(1, c),
                  ((0, 0), (0, pad_c)), constant_values=NEG_INF)

    kernel = functools.partial(_bag_average_kernel,
                               inv_n=1.0 / n, mxu_dtype=compute_dtype)

    probs = pl.pallas_call(
        kernel,
        out_shape=jax.ShapeDtypeStruct((bp, cp), jnp.float32),
        grid=(bp // tb,),
        in_specs=[
            pl.BlockSpec((tb, n, d), lambda i: (i, 0, 0)),   # TB bags per step
            pl.BlockSpec((d, cp), lambda i: (0, 0)),         # weight: resident
            pl.BlockSpec((1, cp), lambda i: (0, 0)),         # bias: resident
        ],
        out_specs=pl.BlockSpec((tb, cp), lambda i: (i, 0)),  # dense (TB, 128)
        compiler_params=pltpu.CompilerParams(
            dimension_semantics=("parallel",)),
    )(feats, w_p, b_p)

    return probs[:b, :c], 0


def bag_average_forward(features, weight, bias, *, compute_dtype=jnp.bfloat16):
    """Single-bag path matching the PyTorch module's forward.

    features: (N, D); weight: (D, C) (transposed vs torch's (C, D)); bias: (C,).
    Returns (probs (C,), 0).
    """
    probs, zero = bag_average_forward_batched(
        features[None], weight, bias, compute_dtype=compute_dtype)
    return probs[0], zero


def _reference(features, weight, bias):
    mean = jnp.mean(features.astype(jnp.float32), axis=0)
    logits = mean @ weight.astype(jnp.float32) + bias.astype(jnp.float32)
    return jax.nn.softmax(logits, axis=-1)


if __name__ == "__main__":
    pooling_dim = 32          # small synthetic pooling_dim
    num_instances = 8         # number of (pooling_dim,) feature vectors per bag
    num_bags = 16             # batch of bags -> 2 grid steps of 8 bags each
    num_rel_cls = NUM_REL_CLS

    key = jax.random.PRNGKey(0)
    k_feat, k_w, k_b = jax.random.split(key, 3)

    features_b = jax.random.normal(
        k_feat, (num_bags, num_instances, pooling_dim), jnp.float32)
    # nn.Linear(pooling_dim, 101) params, stored as [D, C].
    weight = jax.random.normal(k_w, (pooling_dim, num_rel_cls), jnp.float32) * 0.05
    bias = jax.random.normal(k_b, (num_rel_cls,), jnp.float32) * 0.01

    ref = jax.vmap(lambda f: _reference(f, weight, bias))(features_b)

    # f32 MXU-input path: tight correctness check.
    probs_f32, _ = bag_average_forward_batched(
        features_b, weight, bias, compute_dtype=jnp.float32)
    probs_f32 = jax.block_until_ready(probs_f32)
    assert probs_f32.shape == (num_bags, num_rel_cls)
    assert jnp.allclose(jnp.sum(probs_f32, axis=-1), 1.0, atol=2e-3)
    assert jnp.allclose(probs_f32, ref, atol=1e-3, rtol=1e-3)

    # Default bf16 MXU-input path (native on v6e/v7x); mean + softmax stay f32.
    probs_bf16, _ = bag_average_forward_batched(
        features_b, weight, bias, compute_dtype=jnp.bfloat16)
    probs_bf16 = jax.block_until_ready(probs_bf16)
    assert probs_bf16.shape == (num_bags, num_rel_cls)
    assert jnp.allclose(jnp.sum(probs_bf16, axis=-1), 1.0, atol=2e-3)
    assert jnp.allclose(probs_bf16, ref, atol=5e-3, rtol=5e-2)

    # Single-bag API matching the PyTorch module's forward.
    p1, zero = bag_average_forward(
        features_b[0], weight, bias, compute_dtype=jnp.float32)
    p1 = jax.block_until_ready(p1)
    assert p1.shape == (num_rel_cls,)
    assert zero == 0
    assert jnp.allclose(p1, ref[0], atol=1e-3, rtol=1e-3)

    print("KERNEL_OK")
</pallas_src>

<mosaic_0001>
module attributes {stable_mosaic.version = 11 : i64} {
  func.func @_bag_average_kernel(%arg0: i32, %arg1: memref<8x8x32xf32, #tpu.memory_space<vmem>>, %arg2: memref<32x128xf32, #tpu.memory_space<vmem>>, %arg3: memref<1x128xf32, #tpu.memory_space<vmem>>, %arg4: memref<8x128xf32, #tpu.memory_space<vmem>>) attributes {dimension_semantics = [#tpu.dimension_semantics<parallel>], iteration_bounds = array<i64: 2>, scalar_prefetch = 0 : i64, scratch_operands = 0 : i64, tpu.core_type = #tpu.core_type<tc>, window_params = [{transform_indices = @transform_0, window_bounds = array<i64: 8, 8, 32>}, {pipeline_mode = #tpu.pipeline_mode<synchronous>, transform_indices = @transform_1, window_bounds = array<i64: 32, 128>}, {pipeline_mode = #tpu.pipeline_mode<synchronous>, transform_indices = @transform_2, window_bounds = array<i64: 1, 128>}, {transform_indices = @transform_3, window_bounds = array<i64: 8, 128>}]} {
    %c0 = arith.constant 0 : index
    %c0_0 = arith.constant 0 : index
    %c0_1 = arith.constant 0 : index
    %0 = vector.load %arg1[%c0, %c0_0, %c0_1] : memref<8x8x32xf32, #tpu.memory_space<vmem>>, vector<8x8x32xf32>
    %cst = arith.constant dense<0.000000e+00> : vector<8x32xf32>
    %1 = vector.multi_reduction <add>, %0, %cst [1] : vector<8x8x32xf32> to vector<8x32xf32>
    %cst_2 = arith.constant 1.250000e-01 : f32
    %2 = vector.broadcast %cst_2 : f32 to vector<8x32xf32>
    %3 = arith.mulf %1, %2 : vector<8x32xf32>
    %c0_3 = arith.constant 0 : index
    %c0_4 = arith.constant 0 : index
    %4 = vector.load %arg2[%c0_3, %c0_4] : memref<32x128xf32, #tpu.memory_space<vmem>>, vector<32x128xf32>
    %cst_5 = arith.constant dense<0.000000e+00> : vector<8x128xf32>
    %5 = tpu.matmul %3, %4, %cst_5 {dimension_numbers = #tpu.dot_dimension_numbers<[1], [0], [0], [1], [0, 0, 1, 1], [], []>} : vector<8x32xf32>, vector<32x128xf32>, vector<8x128xf32> -> vector<8x128xf32>
    %c0_6 = arith.constant 0 : index
    %c0_7 = arith.constant 0 : index
    %6 = vector.load %arg3[%c0_6, %c0_7] : memref<1x128xf32, #tpu.memory_space<vmem>>, vector<1x128xf32>
    %7 = vector.broadcast %6 : vector<1x128xf32> to vector<8x128xf32>
    %8 = arith.addf %5, %7 : vector<8x128xf32>
    %cst_8 = arith.constant dense<0xFF800000> : vector<8xf32>
    %9 = vector.multi_reduction <maximumf>, %8, %cst_8 [1] : vector<8x128xf32> to vector<8xf32>
    %10 = vector.shape_cast %9 : vector<8xf32> to vector<8x1xf32>
    %11 = vector.broadcast %10 : vector<8x1xf32> to vector<8x128xf32>
    %12 = arith.subf %8, %11 : vector<8x128xf32>
    %13 = math.exp %12 : vector<8x128xf32>
    %cst_9 = arith.constant dense<0.000000e+00> : vector<8xf32>
    %14 = vector.multi_reduction <add>, %13, %cst_9 [1] : vector<8x128xf32> to vector<8xf32>
    %15 = vector.shape_cast %14 : vector<8xf32> to vector<8x1xf32>
    %16 = vector.broadcast %15 : vector<8x1xf32> to vector<8x128xf32>
    %17 = arith.divf %13, %16 : vector<8x128xf32>
    %c0_10 = arith.constant 0 : index
    %c0_11 = arith.constant 0 : index
    %18 = vector.load %arg4[%c0_10, %c0_11] : memref<8x128xf32, #tpu.memory_space<vmem>>, vector<8x128xf32>
    tpu.vector_store %arg4[%c0_10, %c0_11], %17 {strides = array<i32>} : memref<8x128xf32, #tpu.memory_space<vmem>>, vector<8x128xf32>,
    return
  }
  func.func @transform_0(%arg0: i32) -> (i32, i32, i32) {
    %c0_i32 = arith.constant 0 : i32
    %c0_i32_0 = arith.constant 0 : i32
    %c0_i32_1 = arith.constant 0 : i32
    return %arg0, %c0_i32, %c0_i32_0 : i32, i32, i32
  }
  func.func @transform_1(%arg0: i32) -> (i32, i32) {
    %c0_i32 = arith.constant 0 : i32
    %c0_i32_0 = arith.constant 0 : i32
    %c0_i32_1 = arith.constant 0 : i32
    return %c0_i32, %c0_i32_0 : i32, i32
  }
  func.func @transform_2(%arg0: i32) -> (i32, i32) {
    %c0_i32 = arith.constant 0 : i32
    %c0_i32_0 = arith.constant 0 : i32
    %c0_i32_1 = arith.constant 0 : i32
    return %c0_i32, %c0_i32_0 : i32, i32
  }
  func.func @transform_3(%arg0: i32) -> (i32, i32) {
    %c0_i32 = arith.constant 0 : i32
    %c0_i32_0 = arith.constant 0 : i32
    return %arg0, %c0_i32 : i32, i32
  }
}

</mosaic_0001>

<llo_original>
// kernel: tpu_custom_call.1
$region0: #{tpu_custom_call.1}
  #allocation0 [shape = 'u32[]', space=smem, size = 0x4, offset = 0x4, fixed_abs, tag = 'smem constant byte address 0x4 - core index']
  #allocation1 [shape = 'u32[72,128]{1,0:T(1,128)}', space=vmem, size = 0x9000, scoped, tag = 'internal scratch']
  %s0 = inlined_call_operand.hbm [shape: f32[16,8,32], index: 0, kind: input, shape index: {}]
  %s1 = inlined_call_operand.hbm [shape: f32[32,128], index: 1, kind: input, shape index: {}]
  %s2 = inlined_call_operand.vmem [shape: f32[1,128], index: 2, kind: input, shape index: {}]
  %s3 = inlined_call_operand.hbm [shape: f32[16,128], index: 3, kind: output, shape index: {}]
  %s4 = sld [smem:[#allocation0]]
  $region53: #{tpu_custom_call.1} parent=0
    _
  %s6 = ssub.s32 1, %s4
  %s7 = scalar_select 0, %s6, %s4
  $region1: #{tpu_custom_call.1} parent=0
    #allocation2 [shape = 'u8[65536]{0}', space=vmem, size = 0x10000, scoped, tag = 'input window, operand 0']
    #allocation3 [shape = 's32[2]{0}', space=sflag, size = 0x8, scoped, tag = 'scoped memory for tpu_custom_call.1']
    #allocation4 [shape = 's32[2]{0}', space=sflag, size = 0x8, scoped, tag = 'scoped memory for tpu_custom_call.1']
    #allocation5 [shape = 'u8[16384]{0}', space=vmem, size = 0x4000, scoped, tag = 'input window, operand 1, single buffered']
    #allocation6 [shape = 's32[1]{0}', space=sflag, size = 0x4, scoped, tag = 'scoped memory for tpu_custom_call.1']
    #allocation7 [shape = 'u8[8192]{0}', space=vmem, size = 0x2000, scoped, tag = 'output window, operand 0']
    %8 = vsyncpa [#allocation3], 0
    %s9 = scalar_lea.sflag [#allocation3], 1
    %10 = vsyncpa %s9, 0
    %11 = vsyncpa [#allocation6], 0
    %12 = vsyncpa [#allocation4], 0
    %s13 = scalar_lea.sflag [#allocation4], 1
    %14 = vsyncpa %s13, 0
    loop: start=0, step=1, limit=4
    $region2: #{tpu_custom_call.1} parent=1 // loop_pre_header
      _
    $region3: #{tpu_custom_call.1} parent=1 // loop_header
      %s16 = sphi 0, %s20
      %p17 = scmp.ge.s32.totalorder %s16, 4
      %s26 = sphi 0, %s28
      %s29 = sphi 0, %s26
      %s30 = sphi 0, %s29
      %s46 = sphi 0, %s30
      %s50 = sphi 0, %s50
      %s52 = sphi 0, %s50
      %s53 = sphi 0, %s52
      %s67 = sphi 0, %s53
      %s71 = sphi 0, %s71
      %s73 = sphi 0, %s71
      %s74 = sphi 0, %s73
      %s88 = sphi 0, %s74
      %s94 = sphi 0, %s96
      %s97 = sphi 0, %s94
      %s98 = sphi 0, %s97
      %s114 = sphi 0, %s98
    $region4: #{tpu_custom_call.1} parent=1 // loop_header_branch
      %19 = sbr.rel (%p17) target = $region8
    $region5: #{tpu_custom_call.1} parent=1 // loop_body
      %s21 = ssub.s32 %s16, 1
      %s22 = ssub.s32 %s16, 2
      %s23 = sadd.s32 %s16, 1
      %s24 = ssub.s32 %s16, %s23
      %p25 = scmp.eq.s32.totalorder %s24, 0
      %s27 = sadd.s32 %s26, 1
      %s28 = scalar_select %p25, %s26, %s27
      %p31 = pneg %p25
      %p32 = scmp.eq.s32.totalorder %s16, 1
      %p33 = por %p31, %p32
      %p34 = scmp.ne.s32.totalorder %s26, %s29
      %p35 = scmp.eq.s32.totalorder %s16, 0
      %p36 = por %p34, %p35
      %p37 = scmp.ne.s32.totalorder %s26, %s29
      %p38 = scmp.eq.s32.totalorder %s21, 1
      %p39 = por %p37, %p38
      %p40 = scmp.ne.s32.totalorder %s29, %s30
      %p41 = scmp.eq.s32.totalorder %s21, 0
      %p42 = por %p40, %p41
      %p43 = scmp.ne.s32.totalorder %s29, %s30
      %p44 = scmp.eq.s32.totalorder %s22, 1
      %p45 = por %p43, %p44
      %p47 = scmp.ne.s32.totalorder %s30, %s46
      %p48 = scmp.eq.s32.totalorder %s22, 0
      %p49 = por %p47, %p48
      %s51 = sadd.s32 %s50, 1
      %p54 = scmp.eq.s32.totalorder %s16, 1
      %p55 = scmp.ne.s32.totalorder %s50, %s52
      %p56 = scmp.eq.s32.totalorder %s16, 0
      %p57 = por %p55, %p56
      %p58 = scmp.ne.s32.totalorder %s50, %s52
      %p59 = scmp.eq.s32.totalorder %s21, 1
      %p60 = por %p58, %p59
      %p61 = scmp.ne.s32.totalorder %s52, %s53
      %p62 = scmp.eq.s32.totalorder %s21, 0
      %p63 = por %p61, %p62
      %p64 = scmp.ne.s32.totalorder %s52, %s53
      %p65 = scmp.eq.s32.totalorder %s22, 1
      %p66 = por %p64, %p65
      %p68 = scmp.ne.s32.totalorder %s53, %s67
      %p69 = scmp.eq.s32.totalorder %s22, 0
      %p70 = por %p68, %p69
      %s72 = sadd.s32 %s71, 1
      %p75 = scmp.eq.s32.totalorder %s16, 1
      %p76 = scmp.ne.s32.totalorder %s71, %s73
      %p77 = scmp.eq.s32.totalorder %s16, 0
      %p78 = por %p76, %p77
      %p79 = scmp.ne.s32.totalorder %s71, %s73
      %p80 = scmp.eq.s32.totalorder %s21, 1
      %p81 = por %p79, %p80
      %p82 = scmp.ne.s32.totalorder %s73, %s74
      %p83 = scmp.eq.s32.totalorder %s21, 0
      %p84 = por %p82, %p83
      %p85 = scmp.ne.s32.totalorder %s73, %s74
      %p86 = scmp.eq.s32.totalorder %s22, 1
      %p87 = por %p85, %p86
      %p89 = scmp.ne.s32.totalorder %s74, %s88
      %p90 = scmp.eq.s32.totalorder %s22, 0
      %p91 = por %p89, %p90
      %s92 = ssub.s32 %s16, %s23
      %p93 = scmp.eq.s32.totalorder %s92, 0
      %s95 = sadd.s32 %s94, 1
      %s96 = scalar_select %p93, %s94, %s95
      %p99 = pneg %p93
      %p100 = scmp.eq.s32.totalorder %s16, 1
      %p101 = por %p99, %p100
      %p102 = scmp.ne.s32.totalorder %s94, %s97
      %p103 = scmp.eq.s32.totalorder %s16, 0
      %p104 = por %p102, %p103
      %p105 = scmp.ne.s32.totalorder %s94, %s97
      %p106 = scmp.eq.s32.totalorder %s21, 1
      %p107 = por %p105, %p106
      %p108 = scmp.ne.s32.totalorder %s97, %s98
      %p109 = scmp.eq.s32.totalorder %s21, 0
      %p110 = por %p108, %p109
      %p111 = scmp.ne.s32.totalorder %s97, %s98
      %p112 = scmp.eq.s32.totalorder %s22, 1
      %p113 = por %p111, %p112
      %p115 = scmp.ne.s32.totalorder %s98, %s114
      %p116 = scmp.eq.s32.totalorder %s22, 0
      %p117 = por %p115, %p116
      %p118 = scmp.le.s32.totalorder 1, %s16
      %p119 = scmp.lt.s32.totalorder %s16, 3
      %p120 = pnand %p118, %p119
      %p121 = pneg %p120
      // Predicated region
      $region9: #{tpu_custom_call.1} parent=5 // pred_check
        _
      $region10: #{tpu_custom_call.1} parent=5 // pred_check_branch
        %123 = sbr.rel (%p120) target = $region12
      $region11: #{tpu_custom_call.1} parent=5 // pred_region
        %s124 = ssub.s32 %s16, 1
        // Predicated region
        $region13: #{tpu_custom_call.1} parent=11 // pred_check
          %p125 = pneg %p63
        $region14: #{tpu_custom_call.1} parent=11 // pred_check_branch
          %127 = sbr.rel (%p125) target = $region16
        $region15: #{tpu_custom_call.1} parent=11 // pred_region
          %129 = vsyncadd [#allocation6], 0
          %s130 = sshll.u32 %s1, 4
          %s131 = int_to_ptr.hbm [resolvable:$true] %s130
          %s132 = sshll.u32 [#allocation5], 4
          %s133 = int_to_ptr.vmem [resolvable:$true] %s132
          %138 = dma.hbm_to_vmem [thread:$0]  %s131, 512, %s133, [#allocation6], 128, 128, 8
        $region16: #{tpu_custom_call.1} parent=11 // pred_fallthru
          _
        // Predicated region
        $region17: #{tpu_custom_call.1} parent=11 // pred_check
          %p139 = pneg %p84
        $region18: #{tpu_custom_call.1} parent=11 // pred_check_branch
          %141 = sbr.rel (%p139) target = $region20
        $region19: #{tpu_custom_call.1} parent=11 // pred_region
          _
        $region20: #{tpu_custom_call.1} parent=11 // pred_fallthru
          _
      $region12: #{tpu_custom_call.1} parent=5 // pred_fallthru
        _
      %p142 = scmp.lt.s32.totalorder %s16, 2
      // Predicated region
      $region21: #{tpu_custom_call.1} parent=5 // pred_check
        %p143 = pneg %p142
      $region22: #{tpu_custom_call.1} parent=5 // pred_check_branch
        %145 = sbr.rel (%p143) target = $region24
      $region23: #{tpu_custom_call.1} parent=5 // pred_region
        // Predicated region
        $region25: #{tpu_custom_call.1} parent=23 // pred_check
          %p146 = pneg %p36
        $region26: #{tpu_custom_call.1} parent=23 // pred_check_branch
          %148 = sbr.rel (%p146) target = $region28
        $region27: #{tpu_custom_call.1} parent=23 // pred_region
          %s149 = sand.u32 %s26, 1
          %s150 = scalar_lea.sflag [#allocation3], %s149
          %s151 = sand.u32 %s26, 1
          %s152 = smul.addr %s151, 64
          %s153 = scalar_lea.vmem [#allocation2], %s152
          %s154 = smul.u32 8, %s16
          %156 = vsyncadd %s150, 0
          %s157 = smul.addr %s154, 8
          %s158 = scalar_lea.hbm %s0, %s157
          %s159 = sshll.u32 %s158, 4
          %s160 = int_to_ptr.hbm [resolvable:$true] %s159
          %s161 = sshll.u32 %s153, 4
          %s162 = int_to_ptr.vmem [resolvable:$true] %s161
          %167 = dma.hbm_to_vmem [thread:$0]  %s160, 1024, %s162, %s150, 128, 128, 8
        $region28: #{tpu_custom_call.1} parent=23 // pred_fallthru
          _
      $region24: #{tpu_custom_call.1} parent=5 // pred_fallthru
        _
      %p168 = scmp.le.s32.totalorder 1, %s16
      %p169 = scmp.lt.s32.totalorder %s16, 3
      %p170 = pnand %p168, %p169
      %p171 = pneg %p170
      // Predicated region
      $region29: #{tpu_custom_call.1} parent=5 // pred_check
        _
      $region30: #{tpu_custom_call.1} parent=5 // pred_check_branch
        %173 = sbr.rel (%p170) target = $region32
      $region31: #{tpu_custom_call.1} parent=5 // pred_region
        %s174 = ssub.s32 %s16, 1
        %s175 = sand.u32 %s29, 1
        %s176 = scalar_lea.sflag [#allocation3], %s175
        %s177 = sand.u32 %s29, 1
        %s178 = smul.addr %s177, 64
        %s179 = scalar_lea.vmem [#allocation2], %s178
        // Predicated region
        $region33: #{tpu_custom_call.1} parent=31 // pred_check
          %p180 = pneg %p42
        $region34: #{tpu_custom_call.1} parent=31 // pred_check_branch
          %182 = sbr.rel (%p180) target = $region36
        $region35: #{tpu_custom_call.1} parent=31 // pred_region
          %184 = dma.done %s176, 1024
        $region36: #{tpu_custom_call.1} parent=31 // pred_fallthru
          _
        // Predicated region
        $region37: #{tpu_custom_call.1} parent=31 // pred_check
          %p185 = pneg %p63
        $region38: #{tpu_custom_call.1} parent=31 // pred_check_branch
          %187 = sbr.rel (%p185) target = $region40
        $region39: #{tpu_custom_call.1} parent=31 // pred_region
          %189 = dma.done [#allocation6], 512
        $region40: #{tpu_custom_call.1} parent=31 // pred_fallthru
          _
        %s190 = sand.u32 %s29, 1
        %s191 = scalar_lea.sflag [#allocation3], %s190
        %s192 = sand.u32 %s29, 1
        %s193 = smul.addr %s192, 64
        %s194 = scalar_lea.vmem [#allocation2], %s193
        %p195 = pneg %p42
        %p196 = pneg %p39
        %p197 = pneg %p63
        %p198 = pneg %p60
        %p199 = pneg %p84
        %p200 = pneg %p81
        %p201 = pneg %p110
        %p202 = pneg %p107
        %s203 = sand.u32 %s97, 1
        %s204 = scalar_lea.sflag [#allocation4], %s203
        %s205 = sand.u32 %s97, 1
        %s206 = smul.addr %s205, 8
        %s207 = scalar_lea.vmem [#allocation7], %s206
        %s208 = smul.u32 8, %s21
        %v209 = vld [vmem:[%s179] sm:$0xff]
        %v210 = vld [vmem:[%s179 + $0x8] sm:$0xff]
        %v211 = vld [vmem:[%s179 + $0x10] sm:$0xff]
        %v212 = vld [vmem:[%s179 + $0x18] sm:$0xff]
        %v213 = vld [vmem:[%s179 + $0x20] sm:$0xff]
        %v214 = vld [vmem:[%s179 + $0x28] sm:$0xff]
        %v215 = vld [vmem:[%s179 + $0x30] sm:$0xff]
        %v216 = vld [vmem:[%s179 + $0x38] sm:$0xff]
        %vm217 = vcmask 261120
        %v218 = vsel %vm217, %v209, 0.0
        %v219 = vrot.slane %v218, 4
        %v220 = vadd.f32 %v218, %v219
        %v221 = vrot.slane %v220, 2
        %v222 = vadd.f32 %v220, %v221
        %v223 = vrot.slane %v222, 1
        %v224 = vadd.f32 %v222, %v223
        %v225 = vsel %vm217, %v210, 0.0
        %v226 = vrot.slane %v225, 4
        %v227 = vadd.f32 %v225, %v226
        %v228 = vrot.slane %v227, 2
        %v229 = vadd.f32 %v227, %v228
        %v230 = vrot.slane %v229, 1
        %v231 = vadd.f32 %v229, %v230
        %v232 = vsel %vm217, %v211, 0.0
        %v233 = vrot.slane %v232, 4
        %v234 = vadd.f32 %v232, %v233
        %v235 = vrot.slane %v234, 2
        %v236 = vadd.f32 %v234, %v235
        %v237 = vrot.slane %v236, 1
        %v238 = vadd.f32 %v236, %v237
        %v239 = vsel %vm217, %v212, 0.0
        %v240 = vrot.slane %v239, 4
        %v241 = vadd.f32 %v239, %v240
        %v242 = vrot.slane %v241, 2
        %v243 = vadd.f32 %v241, %v242
        %v244 = vrot.slane %v243, 1
        %v245 = vadd.f32 %v243, %v244
        %v246 = vsel %vm217, %v213, 0.0
        %v247 = vrot.slane %v246, 4
        %v248 = vadd.f32 %v246, %v247
        %v249 = vrot.slane %v248, 2
        %v250 = vadd.f32 %v248, %v249
        %v251 = vrot.slane %v250, 1
        %v252 = vadd.f32 %v250, %v251
        %v253 = vsel %vm217, %v214, 0.0
        %v254 = vrot.slane %v253, 4
        %v255 = vadd.f32 %v253, %v254
        %v256 = vrot.slane %v255, 2
        %v257 = vadd.f32 %v255, %v256
        %v258 = vrot.slane %v257, 1
        %v259 = vadd.f32 %v257, %v258
        %v260 = vsel %vm217, %v215, 0.0
        %v261 = vrot.slane %v260, 4
        %v262 = vadd.f32 %v260, %v261
        %v263 = vrot.slane %v262, 2
        %v264 = vadd.f32 %v262, %v263
        %v265 = vrot.slane %v264, 1
        %v266 = vadd.f32 %v264, %v265
        %v267 = vsel %vm217, %v216, 0.0
        %v268 = vrot.slane %v267, 4
        %v269 = vadd.f32 %v267, %v268
        %v270 = vrot.slane %v269, 2
        %v271 = vadd.f32 %v269, %v270
        %v272 = vrot.slane %v271, 1
        %v273 = vadd.f32 %v271, %v272
        %v274 = vmul.f32 %v224, 0.125
        %v275 = vmul.f32 %v231, 0.125
        %v276 = vmul.f32 %v238, 0.125
        %v277 = vmul.f32 %v245, 0.125
        %v278 = vmul.f32 %v252, 0.125
        %v279 = vmul.f32 %v259, 0.125
        %v280 = vmul.f32 %v266, 0.125
        %v281 = vmul.f32 %v273, 0.125
        %v282 = vld [vmem:[#allocation5] sm:$0xff]
        %v283 = vld [vmem:[#allocation5 + $0x8] sm:$0xff]
        %v284 = vld [vmem:[#allocation5 + $0x10] sm:$0xff]
        %v285 = vld [vmem:[#allocation5 + $0x18] sm:$0xff]
        %v286 = vld [vmem:[%s2] sm:$0x1]
        %v288 = vperm.slane %v286, 0
        %vm298 = vcmask 1041409
        %v299 = vsel %vm298, %v275, %v274
        %vm300 = vcmask 1042434
        %v301 = vsel %vm300, %v276, %v299
        %vm302 = vcmask 1043459
        %v303 = vsel %vm302, %v277, %v301
        %vm304 = vcmask 1044484
        %v305 = vsel %vm304, %v278, %v303
        %vm306 = vcmask 1045509
        %v307 = vsel %vm306, %v279, %v305
        %vm308 = vcmask 1046534
        %v309 = vsel %vm308, %v280, %v307
        %vm310 = vcmask 1047559
        %v311 = vsel %vm310, %v281, %v309
        %v312 = vsel %vm217, %v311, 0
        %314 = vmatpush.msra.mxu0 0.0
        %315 = vmatpush.msra.mxu0 0.0
        %316 = vmatpush.msra.mxu0 0.0
        %317 = vmatpush.msra.mxu0 0.0
        %318 = vmatpush.msra.mxu0 0.0
        %319 = vmatpush.msra.mxu0 0.0
        %320 = vmatpush.msra.mxu0 0.0
        %321 = vmatpush.msra.mxu0 0.0
        %322 = vmatpush.msra.mxu0 0.0
        %323 = vmatpush.msra.mxu0 0.0
        %324 = vmatpush.msra.mxu0 0.0
        %325 = vmatpush.msra.mxu0 0.0
        %326 = vmatpush.msra.mxu0 %v285
        %327 = vmatpush.msra.mxu0 %v284
        %328 = vmatpush.msra.mxu0 %v283
        %329 = vmatpush.msra.mxu0 %v282
        %330 = vmatmul.f32.gmra.mxu0 %v312
        %v331 = vpop.f32.mrf.mxu0
        %v332 = vadd.f32 %v288, %v331
        %333 = vdwg.mxu0
        %334 = vmax.xlane.f32.xlu0 %v332
        %v335 = vpop.xlane.xlu0 %334
        %v336 = vsub.f32 %v332, %v335
        %v337 = vmul.f32 %v336, 1.442695
        %v338 = vpow.pop %v337
        %339 = vadd.xlane.f32.xlu0 %v338
        %v340 = vpop.xlane.xlu0 %339
        %v341 = vrcp.pop %v340
        %v342 = vmul.f32 %v340, %v341
        %v343 = vsub.f32 1.0, %v342
        %v344 = vmul.f32 %v341, %v343
        %v345 = vadd.f32 %v341, %v344
        %vm346 = vweird.f32 %v340
        %vm347 = vweird.f32 %v341
        %vm348 = vmor %vm346, %vm347
        %v349 = vsel %vm348, %v341, %v345
        %v350 = vand.u32 2147483647, %v340
        %vm351 = vcmp.eq.f32.partialorder %v350, 8.507059e+37
        %v352 = vand.u32 %v340, 2147483648
        %v353 = vor.u32 1.1754944e-38, %v352
        %v354 = vsel %vm351, %v353, %v349
        %v355 = vmul.f32 %v338, %v354
        %356 = vst [vmem:[%s207] sm:$0xff] %v355
        %s357 = sand.u32 %s97, 1
        %s358 = scalar_lea.sflag [#allocation4], %s357
        %s359 = sand.u32 %s97, 1
        %s360 = smul.addr %s359, 8
        %s361 = scalar_lea.vmem [#allocation7], %s360
        // Predicated region
        $region41: #{tpu_custom_call.1} parent=31 // pred_check
          %p362 = pneg %p107
        $region42: #{tpu_custom_call.1} parent=31 // pred_check_branch
          %364 = sbr.rel (%p362) target = $region44
        $region43: #{tpu_custom_call.1} parent=31 // pred_region
          %366 = vsyncadd %s358, 0
          %s367 = smul.addr %s21, 8
          %s368 = scalar_lea.hbm %s3, %s367
          %s370 = sshll.u32 %s361, 4
          %s371 = int_to_ptr.vmem [resolvable:$true] %s370
          %s372 = sshll.u32 %s368, 4
          %s373 = int_to_ptr.hbm [resolvable:$true] %s372
          %375 = dma.vmem_to_hbm [thread:$0]  %s371, 128, %s373, %s358
        $region44: #{tpu_custom_call.1} parent=31 // pred_fallthru
          _
      $region32: #{tpu_custom_call.1} parent=5 // pred_fallthru
        _
      %p376 = scmp.le.s32.totalorder 2, %s16
      // Predicated region
      $region45: #{tpu_custom_call.1} parent=5 // pred_check
        %p377 = pneg %p376
      $region46: #{tpu_custom_call.1} parent=5 // pred_check_branch
        %379 = sbr.rel (%p377) target = $region48
      $region47: #{tpu_custom_call.1} parent=5 // pred_region
        %s380 = ssub.s32 %s16, 2
        // Predicated region
        $region49: #{tpu_custom_call.1} parent=47 // pred_check
          %p381 = pneg %p113
        $region50: #{tpu_custom_call.1} parent=47 // pred_check_branch
          %383 = sbr.rel (%p381) target = $region52
        $region51: #{tpu_custom_call.1} parent=47 // pred_region
          %s384 = sand.u32 %s98, 1
          %s385 = scalar_lea.sflag [#allocation4], %s384
          %s386 = sand.u32 %s98, 1
          %s387 = smul.addr %s386, 8
          %s388 = scalar_lea.vmem [#allocation7], %s387
          %390 = dma.done %s385, 128
        $region52: #{tpu_custom_call.1} parent=47 // pred_fallthru
          _
      $region48: #{tpu_custom_call.1} parent=5 // pred_fallthru
        _
    $region6: #{tpu_custom_call.1} parent=1 // loop_footer
      %s20 = sadd.s32 1, %s16
    $region7: #{tpu_custom_call.1} parent=1 // loop_footer_branch
      %15 = sbr.rel target = $region3
    $region8: #{tpu_custom_call.1} parent=1 // loop_exit
      _
    %391 = vsyncpa [#allocation3], 1
    %s392 = scalar_lea.sflag [#allocation3], 1
    %393 = vsyncpa %s392, 1
    %394 = vsyncpa [#allocation6], 1
    %395 = vsyncpa [#allocation4], 1
    %s396 = scalar_lea.sflag [#allocation4], 1
    %397 = vsyncpa %s396, 1

</llo_original>
